<compile_context>
chip_gen: v6e
topology: v6e:2x2x1
jax: 0.10.0
libtpu: 0.0.40
codegen_flags: <defaults>
</compile_context>

<pallas_src>
import math

import jax
import jax.numpy as jnp
from jax import lax
from jax.experimental import pallas as pl
from jax.experimental.pallas import tpu as pltpu


def _remain_kernel(val_ref, pe_ref, gt_ref, tgt_ref, out_ref):
    # val_ref : (bt, L, D)    token features for bt batch elements
    # pe_ref  : (L, D)        shared sinusoidal positional encoding
    # gt_ref  : (1, D)        learnable global token
    # tgt_ref : (bt, 1, Rp)   int32 gather targets: [-1, idx_0 .. idx_{Lk-1}, -1 ...]
    # out_ref : (bt, Rp, D)   [global_token ; gathered(val + pe) ; zero pad rows]
    x = val_ref[...] + pe_ref[...][None]                     # (bt, L, D) single VPU add
    tgt = tgt_ref[...]                                       # (bt, 1, Rp)

    L = x.shape[1]
    Rp = tgt.shape[-1]

    # One-hot gather on the MXU. Rows whose target is -1 (the global-token row
    # and the sublane-pad rows) select nothing and come out as zeros.
    iota_l = lax.broadcasted_iota(jnp.int32, (L, Rp), 0)     # (L, Rp), built once
    onehot = (iota_l[None] == tgt).astype(x.dtype)           # (bt, L, Rp)
    gathered = lax.dot_general(
        onehot, x,
        dimension_numbers=(((1,), (1,)), ((0,), (0,))),      # contract L, batch bt
        preferred_element_type=jnp.float32,
        precision=lax.Precision.HIGHEST)                     # bit-exact gather
    # gathered: (bt, Rp, D)

    # Merge the global token into row 0 and emit ONE full-tile, aligned store.
    row0 = lax.broadcasted_iota(jnp.int32, (Rp, D), 0) == 0  # (Rp, D)
    result = jnp.where(row0[None], gt_ref[...][None], gathered)
    out_ref[...] = result.astype(out_ref.dtype)


def remain_forward(val, global_token, pe, remain_idx, *, bt=None):
    """val: [B, L, D], global_token: [1, D], pe: [L, D], remain_idx: [B, Lk] int32.

    Returns [B, Lk+1, D] = [global_token ; (val + pe) gathered at remain_idx].
    """
    B, L, D = val.shape
    Lk = remain_idx.shape[-1]
    rows = Lk + 1
    # Pad the row count to a sublane multiple so the kernel's single store is
    # fully (8,128)-aligned (D should be a multiple of 128 at real sizes).
    rows_pad = ((rows + 7) // 8) * 8

    if bt is None:
        bt = 2 if B % 2 == 0 else 1
    assert B % bt == 0, "batch tile must divide batch"

    # Augmented per-output-row gather targets, built once outside the kernel:
    #   row 0             -> -1 (overwritten with the global token in-kernel)
    #   rows 1 .. Lk      -> remain indices
    #   rows Lk+1 .. Rp-1 -> -1 (sublane padding, comes out as zeros)
    tgt = jnp.full((B, rows_pad), -1, dtype=jnp.int32)
    tgt = tgt.at[:, 1:rows].set(remain_idx.astype(jnp.int32))
    tgt3 = tgt.reshape(B, 1, rows_pad)

    out_padded = pl.pallas_call(
        _remain_kernel,
        out_shape=jax.ShapeDtypeStruct((B, rows_pad, D), val.dtype),
        grid=(B // bt,),
        in_specs=[
            pl.BlockSpec((bt, L, D), lambda b: (b, 0, 0)),         # val (batch tile)
            pl.BlockSpec((L, D), lambda b: (0, 0)),                # pe (shared)
            pl.BlockSpec((1, D), lambda b: (0, 0)),                # global token (shared)
            pl.BlockSpec((bt, 1, rows_pad), lambda b: (b, 0, 0)),  # gather targets
        ],
        out_specs=pl.BlockSpec((bt, rows_pad, D), lambda b: (b, 0, 0)),
        compiler_params=pltpu.CompilerParams(dimension_semantics=("parallel",)),
    )(val, pe, global_token, tgt3)

    if rows_pad == rows:
        return out_padded
    # Real-model consumers can take the padded layout directly and skip this slice.
    return out_padded[:, :rows, :]


def sinusoidal_pe(L, D, dtype=jnp.float32):
    pos = jnp.arange(L, dtype=jnp.float32)[:, None]
    div = jnp.exp(jnp.arange(0, D, 2, dtype=jnp.float32) * (-math.log(10000.0) / D))
    pe = jnp.zeros((L, D), jnp.float32)
    pe = pe.at[:, 0::2].set(jnp.sin(pos * div))
    pe = pe.at[:, 1::2].set(jnp.cos(pos * div))
    return pe.astype(dtype)


if __name__ == "__main__":
    key = jax.random.PRNGKey(0)
    B, L, D = 4, 16, 128         # batch, seq_len, d_model (lane-dense D)
    remain_rto = 0.5             # keep ratio
    Lk = int(L * remain_rto)

    k_val, k_gt, k_perm = jax.random.split(key, 3)

    # deterministic "module parameters" / inputs
    val = jax.random.normal(k_val, (B, L, D), jnp.float32)
    global_token = jax.random.uniform(k_gt, (1, D), jnp.float32)  # torch.rand(1, d_model)
    pe = sinusoidal_pe(L, D)

    # idx_dict-style per-batch shuffle; keep the first Lk indices as "remain"
    perms = jnp.stack([jax.random.permutation(k, L)
                       for k in jax.random.split(k_perm, B)])
    remain_idx = perms[:, :Lk].astype(jnp.int32)

    out = jax.block_until_ready(
        remain_forward(val, global_token, pe, remain_idx, bt=2))

    # pure-JAX reference
    x_ref = val + pe[None]
    gathered_ref = jax.vmap(lambda xb, ib: xb[ib])(x_ref, remain_idx)
    ref = jnp.concatenate(
        [jnp.broadcast_to(global_token[None], (B, 1, D)), gathered_ref], axis=1)

    assert out.shape == (B, Lk + 1, D)
    assert jnp.allclose(out, ref, atol=1e-5), "Pallas kernel mismatch vs reference"
    print("KERNEL_OK")
</pallas_src>

<mosaic_0001>
module attributes {stable_mosaic.version = 11 : i64} {
  func.func @_remain_kernel(%arg0: i32, %arg1: memref<2x16x128xf32, #tpu.memory_space<vmem>>, %arg2: memref<16x128xf32, #tpu.memory_space<vmem>>, %arg3: memref<1x128xf32, #tpu.memory_space<vmem>>, %arg4: memref<2x1x16xi32, #tpu.memory_space<vmem>>, %arg5: memref<2x16x128xf32, #tpu.memory_space<vmem>>) attributes {dimension_semantics = [#tpu.dimension_semantics<parallel>], iteration_bounds = array<i64: 2>, scalar_prefetch = 0 : i64, scratch_operands = 0 : i64, tpu.core_type = #tpu.core_type<tc>, window_params = [{transform_indices = @transform_0, window_bounds = array<i64: 2, 16, 128>}, {pipeline_mode = #tpu.pipeline_mode<synchronous>, transform_indices = @transform_1, window_bounds = array<i64: 16, 128>}, {pipeline_mode = #tpu.pipeline_mode<synchronous>, transform_indices = @transform_2, window_bounds = array<i64: 1, 128>}, {transform_indices = @transform_3, window_bounds = array<i64: 2, 1, 16>}, {transform_indices = @transform_4, window_bounds = array<i64: 2, 16, 128>}]} {
    %c0 = arith.constant 0 : index
    %c0_0 = arith.constant 0 : index
    %c0_1 = arith.constant 0 : index
    %0 = vector.load %arg1[%c0, %c0_0, %c0_1] : memref<2x16x128xf32, #tpu.memory_space<vmem>>, vector<2x16x128xf32>
    %c0_2 = arith.constant 0 : index
    %c0_3 = arith.constant 0 : index
    %1 = vector.load %arg2[%c0_2, %c0_3] : memref<16x128xf32, #tpu.memory_space<vmem>>, vector<16x128xf32>
    %2 = vector.shape_cast %1 : vector<16x128xf32> to vector<1x16x128xf32>
    %3 = vector.broadcast %2 : vector<1x16x128xf32> to vector<2x16x128xf32>
    %4 = arith.addf %0, %3 : vector<2x16x128xf32>
    %c0_4 = arith.constant 0 : index
    %c0_5 = arith.constant 0 : index
    %c0_6 = arith.constant 0 : index
    %5 = vector.load %arg4[%c0_4, %c0_5, %c0_6] : memref<2x1x16xi32, #tpu.memory_space<vmem>>, vector<2x1x16xi32>
    %6 = tpu.iota {dimensions = array<i32: 0>} : vector<16x16xi32>
    %7 = vector.shape_cast %6 : vector<16x16xi32> to vector<1x16x16xi32>
    %8 = vector.broadcast %7 : vector<1x16x16xi32> to vector<2x16x16xi32>
    %9 = vector.broadcast %5 : vector<2x1x16xi32> to vector<2x16x16xi32>
    %10 = arith.cmpi eq, %8, %9 : vector<2x16x16xi32>
    %11 = arith.extui %10 : vector<2x16x16xi1> to vector<2x16x16xi32>
    %12 = arith.sitofp %11 : vector<2x16x16xi32> to vector<2x16x16xf32>
    %cst = arith.constant dense<0.000000e+00> : vector<2x16x128xf32>
    %13 = tpu.matmul %12, %4, %cst {dimension_numbers = #tpu.dot_dimension_numbers<[1], [1], [2], [2], [0, 0, 0, 2, 1, 2], [0], [0]>, precision = #tpu.contract_precision<fp32>} : vector<2x16x16xf32>, vector<2x16x128xf32>, vector<2x16x128xf32> -> vector<2x16x128xf32>
    %14 = tpu.iota {dimensions = array<i32: 0>} : vector<16x128xi32>
    %c0_i32 = arith.constant 0 : i32
    %15 = vector.broadcast %c0_i32 : i32 to vector<16x128xi32>
    %16 = arith.cmpi eq, %14, %15 : vector<16x128xi32>
    %17 = vector.shape_cast %16 : vector<16x128xi1> to vector<1x16x128xi1>
    %c0_7 = arith.constant 0 : index
    %c0_8 = arith.constant 0 : index
    %18 = vector.load %arg3[%c0_7, %c0_8] : memref<1x128xf32, #tpu.memory_space<vmem>>, vector<1x128xf32>
    %19 = vector.shape_cast %18 : vector<1x128xf32> to vector<1x1x128xf32>
    %20 = vector.shape_cast %17 : vector<1x16x128xi1> to vector<1x16x128xi1>
    %21 = vector.broadcast %20 : vector<1x16x128xi1> to vector<2x16x128xi1>
    %22 = vector.shape_cast %19 : vector<1x1x128xf32> to vector<1x1x128xf32>
    %23 = vector.broadcast %22 : vector<1x1x128xf32> to vector<2x16x128xf32>
    %24 = arith.select %21, %23, %13 : vector<2x16x128xi1>, vector<2x16x128xf32>
    %c0_9 = arith.constant 0 : index
    %c0_10 = arith.constant 0 : index
    %c0_11 = arith.constant 0 : index
    %25 = vector.load %arg5[%c0_9, %c0_10, %c0_11] : memref<2x16x128xf32, #tpu.memory_space<vmem>>, vector<2x16x128xf32>
    tpu.vector_store %arg5[%c0_9, %c0_10, %c0_11], %24 {strides = array<i32>} : memref<2x16x128xf32, #tpu.memory_space<vmem>>, vector<2x16x128xf32>,
    return
  }
  func.func @transform_0(%arg0: i32) -> (i32, i32, i32) {
    %c0_i32 = arith.constant 0 : i32
    %c0_i32_0 = arith.constant 0 : i32
    %c0_i32_1 = arith.constant 0 : i32
    return %arg0, %c0_i32, %c0_i32_0 : i32, i32, i32
  }
  func.func @transform_1(%arg0: i32) -> (i32, i32) {
    %c0_i32 = arith.constant 0 : i32
    %c0_i32_0 = arith.constant 0 : i32
    %c0_i32_1 = arith.constant 0 : i32
    return %c0_i32, %c0_i32_0 : i32, i32
  }
  func.func @transform_2(%arg0: i32) -> (i32, i32) {
    %c0_i32 = arith.constant 0 : i32
    %c0_i32_0 = arith.constant 0 : i32
    %c0_i32_1 = arith.constant 0 : i32
    return %c0_i32, %c0_i32_0 : i32, i32
  }
  func.func @transform_3(%arg0: i32) -> (i32, i32, i32) {
    %c0_i32 = arith.constant 0 : i32
    %c0_i32_0 = arith.constant 0 : i32
    %c0_i32_1 = arith.constant 0 : i32
    return %arg0, %c0_i32, %c0_i32_0 : i32, i32, i32
  }
  func.func @transform_4(%arg0: i32) -> (i32, i32, i32) {
    %c0_i32 = arith.constant 0 : i32
    %c0_i32_0 = arith.constant 0 : i32
    %c0_i32_1 = arith.constant 0 : i32
    return %arg0, %c0_i32, %c0_i32_0 : i32, i32, i32
  }
}

</mosaic_0001>

<llo_original>
// kernel: tpu_custom_call.1
$region0: #{tpu_custom_call.1}
  #allocation0 [shape = 'u32[]', space=smem, size = 0x4, offset = 0x4, fixed_abs, tag = 'smem constant byte address 0x4 - core index']
  #allocation1 [shape = 'u32[144,128]{1,0:T(1,128)}', space=vmem, size = 0x12000, scoped, tag = 'internal scratch']
  %s0 = inlined_call_operand.hbm [shape: f32[4,16,128], index: 0, kind: input, shape index: {}]
  %s1 = inlined_call_operand.hbm [shape: f32[16,128], index: 1, kind: input, shape index: {}]
  %s2 = inlined_call_operand.vmem [shape: f32[1,128], index: 2, kind: input, shape index: {}]
  %s3 = inlined_call_operand.vmem [shape: s32[4,1,16], index: 3, kind: input, shape index: {}]
  %s4 = inlined_call_operand.hbm [shape: f32[4,16,128], index: 4, kind: output, shape index: {}]
  %s5 = sld [smem:[#allocation0]]
  $region57: #{tpu_custom_call.1} parent=0
    _
  %s7 = ssub.s32 1, %s5
  %s8 = scalar_select 0, %s7, %s5
  $region1: #{tpu_custom_call.1} parent=0
    #allocation2 [shape = 'u8[32768]{0}', space=vmem, size = 0x8000, scoped, tag = 'input window, operand 0']
    #allocation3 [shape = 's32[2]{0}', space=sflag, size = 0x8, scoped, tag = 'scoped memory for tpu_custom_call.1']
    #allocation4 [shape = 's32[2]{0}', space=sflag, size = 0x8, scoped, tag = 'scoped memory for tpu_custom_call.1']
    #allocation5 [shape = 'u8[8192]{0}', space=vmem, size = 0x2000, scoped, tag = 'input window, operand 1, single buffered']
    #allocation6 [shape = 's32[1]{0}', space=sflag, size = 0x4, scoped, tag = 'scoped memory for tpu_custom_call.1']
    #allocation7 [shape = 'u8[32768]{0}', space=vmem, size = 0x8000, scoped, tag = 'output window, operand 0']
    %9 = vsyncpa [#allocation3], 0
    %s10 = scalar_lea.sflag [#allocation3], 1
    %11 = vsyncpa %s10, 0
    %12 = vsyncpa [#allocation6], 0
    %13 = vsyncpa [#allocation4], 0
    %s14 = scalar_lea.sflag [#allocation4], 1
    %15 = vsyncpa %s14, 0
    loop: start=0, step=1, limit=4
    $region2: #{tpu_custom_call.1} parent=1 // loop_pre_header
      _
    $region3: #{tpu_custom_call.1} parent=1 // loop_header
      %s17 = sphi 0, %s21
      %p18 = scmp.ge.s32.totalorder %s17, 4
      %s27 = sphi 0, %s29
      %s30 = sphi 0, %s27
      %s31 = sphi 0, %s30
      %s47 = sphi 0, %s31
      %s51 = sphi 0, %s51
      %s53 = sphi 0, %s51
      %s54 = sphi 0, %s53
      %s68 = sphi 0, %s54
      %s72 = sphi 0, %s72
      %s74 = sphi 0, %s72
      %s75 = sphi 0, %s74
      %s89 = sphi 0, %s75
      %s95 = sphi 0, %s97
      %s98 = sphi 0, %s95
      %s99 = sphi 0, %s98
      %s115 = sphi 0, %s99
      %s121 = sphi 0, %s123
      %s124 = sphi 0, %s121
      %s125 = sphi 0, %s124
      %s141 = sphi 0, %s125
    $region4: #{tpu_custom_call.1} parent=1 // loop_header_branch
      %20 = sbr.rel (%p18) target = $region8
    $region5: #{tpu_custom_call.1} parent=1 // loop_body
      %s22 = ssub.s32 %s17, 1
      %s23 = ssub.s32 %s17, 2
      %s24 = sadd.s32 %s17, 1
      %s25 = ssub.s32 %s17, %s24
      %p26 = scmp.eq.s32.totalorder %s25, 0
      %s28 = sadd.s32 %s27, 1
      %s29 = scalar_select %p26, %s27, %s28
      %p32 = pneg %p26
      %p33 = scmp.eq.s32.totalorder %s17, 1
      %p34 = por %p32, %p33
      %p35 = scmp.ne.s32.totalorder %s27, %s30
      %p36 = scmp.eq.s32.totalorder %s17, 0
      %p37 = por %p35, %p36
      %p38 = scmp.ne.s32.totalorder %s27, %s30
      %p39 = scmp.eq.s32.totalorder %s22, 1
      %p40 = por %p38, %p39
      %p41 = scmp.ne.s32.totalorder %s30, %s31
      %p42 = scmp.eq.s32.totalorder %s22, 0
      %p43 = por %p41, %p42
      %p44 = scmp.ne.s32.totalorder %s30, %s31
      %p45 = scmp.eq.s32.totalorder %s23, 1
      %p46 = por %p44, %p45
      %p48 = scmp.ne.s32.totalorder %s31, %s47
      %p49 = scmp.eq.s32.totalorder %s23, 0
      %p50 = por %p48, %p49
      %s52 = sadd.s32 %s51, 1
      %p55 = scmp.eq.s32.totalorder %s17, 1
      %p56 = scmp.ne.s32.totalorder %s51, %s53
      %p57 = scmp.eq.s32.totalorder %s17, 0
      %p58 = por %p56, %p57
      %p59 = scmp.ne.s32.totalorder %s51, %s53
      %p60 = scmp.eq.s32.totalorder %s22, 1
      %p61 = por %p59, %p60
      %p62 = scmp.ne.s32.totalorder %s53, %s54
      %p63 = scmp.eq.s32.totalorder %s22, 0
      %p64 = por %p62, %p63
      %p65 = scmp.ne.s32.totalorder %s53, %s54
      %p66 = scmp.eq.s32.totalorder %s23, 1
      %p67 = por %p65, %p66
      %p69 = scmp.ne.s32.totalorder %s54, %s68
      %p70 = scmp.eq.s32.totalorder %s23, 0
      %p71 = por %p69, %p70
      %s73 = sadd.s32 %s72, 1
      %p76 = scmp.eq.s32.totalorder %s17, 1
      %p77 = scmp.ne.s32.totalorder %s72, %s74
      %p78 = scmp.eq.s32.totalorder %s17, 0
      %p79 = por %p77, %p78
      %p80 = scmp.ne.s32.totalorder %s72, %s74
      %p81 = scmp.eq.s32.totalorder %s22, 1
      %p82 = por %p80, %p81
      %p83 = scmp.ne.s32.totalorder %s74, %s75
      %p84 = scmp.eq.s32.totalorder %s22, 0
      %p85 = por %p83, %p84
      %p86 = scmp.ne.s32.totalorder %s74, %s75
      %p87 = scmp.eq.s32.totalorder %s23, 1
      %p88 = por %p86, %p87
      %p90 = scmp.ne.s32.totalorder %s75, %s89
      %p91 = scmp.eq.s32.totalorder %s23, 0
      %p92 = por %p90, %p91
      %s93 = ssub.s32 %s17, %s24
      %p94 = scmp.eq.s32.totalorder %s93, 0
      %s96 = sadd.s32 %s95, 1
      %s97 = scalar_select %p94, %s95, %s96
      %p100 = pneg %p94
      %p101 = scmp.eq.s32.totalorder %s17, 1
      %p102 = por %p100, %p101
      %p103 = scmp.ne.s32.totalorder %s95, %s98
      %p104 = scmp.eq.s32.totalorder %s17, 0
      %p105 = por %p103, %p104
      %p106 = scmp.ne.s32.totalorder %s95, %s98
      %p107 = scmp.eq.s32.totalorder %s22, 1
      %p108 = por %p106, %p107
      %p109 = scmp.ne.s32.totalorder %s98, %s99
      %p110 = scmp.eq.s32.totalorder %s22, 0
      %p111 = por %p109, %p110
      %p112 = scmp.ne.s32.totalorder %s98, %s99
      %p113 = scmp.eq.s32.totalorder %s23, 1
      %p114 = por %p112, %p113
      %p116 = scmp.ne.s32.totalorder %s99, %s115
      %p117 = scmp.eq.s32.totalorder %s23, 0
      %p118 = por %p116, %p117
      %s119 = ssub.s32 %s17, %s24
      %p120 = scmp.eq.s32.totalorder %s119, 0
      %s122 = sadd.s32 %s121, 1
      %s123 = scalar_select %p120, %s121, %s122
      %p126 = pneg %p120
      %p127 = scmp.eq.s32.totalorder %s17, 1
      %p128 = por %p126, %p127
      %p129 = scmp.ne.s32.totalorder %s121, %s124
      %p130 = scmp.eq.s32.totalorder %s17, 0
      %p131 = por %p129, %p130
      %p132 = scmp.ne.s32.totalorder %s121, %s124
      %p133 = scmp.eq.s32.totalorder %s22, 1
      %p134 = por %p132, %p133
      %p135 = scmp.ne.s32.totalorder %s124, %s125
      %p136 = scmp.eq.s32.totalorder %s22, 0
      %p137 = por %p135, %p136
      %p138 = scmp.ne.s32.totalorder %s124, %s125
      %p139 = scmp.eq.s32.totalorder %s23, 1
      %p140 = por %p138, %p139
      %p142 = scmp.ne.s32.totalorder %s125, %s141
      %p143 = scmp.eq.s32.totalorder %s23, 0
      %p144 = por %p142, %p143
      %p145 = scmp.le.s32.totalorder 1, %s17
      %p146 = scmp.lt.s32.totalorder %s17, 3
      %p147 = pnand %p145, %p146
      %p148 = pneg %p147
      // Predicated region
      $region9: #{tpu_custom_call.1} parent=5 // pred_check
        _
      $region10: #{tpu_custom_call.1} parent=5 // pred_check_branch
        %150 = sbr.rel (%p147) target = $region12
      $region11: #{tpu_custom_call.1} parent=5 // pred_region
        %s151 = ssub.s32 %s17, 1
        // Predicated region
        $region13: #{tpu_custom_call.1} parent=11 // pred_check
          %p152 = pneg %p64
        $region14: #{tpu_custom_call.1} parent=11 // pred_check_branch
          %154 = sbr.rel (%p152) target = $region16
        $region15: #{tpu_custom_call.1} parent=11 // pred_region
          %s156 = ssub.s32 256, 256
          %157 = vsyncadd [#allocation6], %s156
          %s158 = sshll.u32 [#allocation5], 4
          %s159 = int_to_ptr.vmem [resolvable:$true] %s158
          %164 = dma.hbm_to_vmem [thread:$0]  %s1, 256, %s159, [#allocation6], 128, 128, 8
        $region16: #{tpu_custom_call.1} parent=11 // pred_fallthru
          _
        // Predicated region
        $region17: #{tpu_custom_call.1} parent=11 // pred_check
          %p165 = pneg %p85
        $region18: #{tpu_custom_call.1} parent=11 // pred_check_branch
          %167 = sbr.rel (%p165) target = $region20
        $region19: #{tpu_custom_call.1} parent=11 // pred_region
          _
        $region20: #{tpu_custom_call.1} parent=11 // pred_fallthru
          _
      $region12: #{tpu_custom_call.1} parent=5 // pred_fallthru
        _
      %p168 = scmp.lt.s32.totalorder %s17, 2
      // Predicated region
      $region21: #{tpu_custom_call.1} parent=5 // pred_check
        %p169 = pneg %p168
      $region22: #{tpu_custom_call.1} parent=5 // pred_check_branch
        %171 = sbr.rel (%p169) target = $region24
      $region23: #{tpu_custom_call.1} parent=5 // pred_region
        // Predicated region
        $region25: #{tpu_custom_call.1} parent=23 // pred_check
          %p172 = pneg %p37
        $region26: #{tpu_custom_call.1} parent=23 // pred_check_branch
          %174 = sbr.rel (%p172) target = $region28
        $region27: #{tpu_custom_call.1} parent=23 // pred_region
          %s175 = sand.u32 %s27, 1
          %s176 = scalar_lea.sflag [#allocation3], %s175
          %s177 = sand.u32 %s27, 1
          %s178 = smul.addr %s177, 32
          %s179 = scalar_lea.vmem [#allocation2], %s178
          %s180 = smul.u32 2, %s17
          %s182 = ssub.s32 512, 512
          %183 = vsyncadd %s176, %s182
          %s184 = smul.addr %s180, 2
          %s185 = smul.addr %s184, 128
          %s186 = scalar_lea.hbm %s0, %s185
          %s187 = sshll.u32 %s179, 4
          %s188 = int_to_ptr.vmem [resolvable:$true] %s187
          %193 = dma.hbm_to_vmem [thread:$0]  %s186, 512, %s188, %s176, 128, 128, 8
        $region28: #{tpu_custom_call.1} parent=23 // pred_fallthru
          _
        // Predicated region
        $region29: #{tpu_custom_call.1} parent=23 // pred_check
          %p194 = pneg %p105
        $region30: #{tpu_custom_call.1} parent=23 // pred_check_branch
          %196 = sbr.rel (%p194) target = $region32
        $region31: #{tpu_custom_call.1} parent=23 // pred_region
          %s197 = smul.u32 2, %s17
          %p198 = scmp.lt.s32.totalorder %s197, 3
          %s199 = scalar_select %p198, %s197, 3
          %s200 = scalar_lea.vmem %s3, %s199
          %s201 = smul.u32 2, %s17
        $region32: #{tpu_custom_call.1} parent=23 // pred_fallthru
          _
      $region24: #{tpu_custom_call.1} parent=5 // pred_fallthru
        _
      %p202 = scmp.le.s32.totalorder 1, %s17
      %p203 = scmp.lt.s32.totalorder %s17, 3
      %p204 = pnand %p202, %p203
      %p205 = pneg %p204
      // Predicated region
      $region33: #{tpu_custom_call.1} parent=5 // pred_check
        _
      $region34: #{tpu_custom_call.1} parent=5 // pred_check_branch
        %207 = sbr.rel (%p204) target = $region36
      $region35: #{tpu_custom_call.1} parent=5 // pred_region
        %s208 = ssub.s32 %s17, 1
        %s209 = sand.u32 %s30, 1
        %s210 = scalar_lea.sflag [#allocation3], %s209
        %s211 = sand.u32 %s30, 1
        %s212 = smul.addr %s211, 32
        %s213 = scalar_lea.vmem [#allocation2], %s212
        // Predicated region
        $region37: #{tpu_custom_call.1} parent=35 // pred_check
          %p214 = pneg %p43
        $region38: #{tpu_custom_call.1} parent=35 // pred_check_branch
          %216 = sbr.rel (%p214) target = $region40
        $region39: #{tpu_custom_call.1} parent=35 // pred_region
          %217 = dma.done %s210, 512
        $region40: #{tpu_custom_call.1} parent=35 // pred_fallthru
          _
        // Predicated region
        $region41: #{tpu_custom_call.1} parent=35 // pred_check
          %p218 = pneg %p64
        $region42: #{tpu_custom_call.1} parent=35 // pred_check_branch
          %220 = sbr.rel (%p218) target = $region44
        $region43: #{tpu_custom_call.1} parent=35 // pred_region
          %221 = dma.done [#allocation6], 256
        $region44: #{tpu_custom_call.1} parent=35 // pred_fallthru
          _
        %s222 = sand.u32 %s30, 1
        %s223 = scalar_lea.sflag [#allocation3], %s222
        %s224 = sand.u32 %s30, 1
        %s225 = smul.addr %s224, 32
        %s226 = scalar_lea.vmem [#allocation2], %s225
        %p227 = pneg %p43
        %p228 = pneg %p40
        %p229 = pneg %p64
        %p230 = pneg %p61
        %p231 = pneg %p85
        %p232 = pneg %p82
        %s233 = smul.u32 2, %s22
        %p234 = scmp.lt.s32.totalorder %s233, 3
        %s235 = scalar_select %p234, %s233, 3
        %s236 = scalar_lea.vmem %s3, %s235
        %p237 = pneg %p111
        %p238 = pneg %p108
        %p239 = pneg %p137
        %p240 = pneg %p134
        %s241 = sand.u32 %s124, 1
        %s242 = scalar_lea.sflag [#allocation4], %s241
        %s243 = sand.u32 %s124, 1
        %s244 = smul.addr %s243, 32
        %s245 = scalar_lea.vmem [#allocation7], %s244
        %s246 = smul.u32 2, %s22
        %s247 = smul.u32 2, %s22
        %p248 = scmp.lt.s32.totalorder %s247, 3
        %s249 = scalar_select %p248, %s247, 3
        %s250 = scalar_lea.vmem %s3, %s249
        %s251 = smul.u32 2, %s22
        %s252 = smul.u32 2, %s22
        %v253 = vld [vmem:[%s213] sm:$0xff]
        %v254 = vld [vmem:[%s213 + $0x8] sm:$0xff]
        %v255 = vld [vmem:[%s213 + $0x10] sm:$0xff]
        %v256 = vld [vmem:[%s213 + $0x18] sm:$0xff]
        %v257 = vld [vmem:[#allocation5] sm:$0xff]
        %v258 = vld [vmem:[#allocation5 + $0x8] sm:$0xff]
        %v259 = vadd.f32 %v253, %v257
        %v260 = vadd.f32 %v254, %v258
        %v261 = vadd.f32 %v255, %v257
        %v262 = vadd.f32 %v256, %v258
        %v263 = vld [vmem:[%s250] sm:$0x1]
        %v264 = vld [vmem:[%s250 + $0x1] sm:$0x1]
        %v265 = vlaneseq
        %v266 = vshrl.u32 %v265, 7
        %v267 = vadd.s32 %v266, 8
        %v268 = vlaneseq
        %v269 = vshrl.u32 %v268, 7
        %v270 = vsub.s32 0, %v269
        %v271 = vrot.slane %v263, %v270
        %v272 = vlaneseq
        %v273 = vshrl.u32 %v272, 7
        %v274 = vsub.s32 0, %v273
        %v275 = vrot.slane %v264, %v274
        %vm276 = vcmp.eq.s32.totalorder %v266, %v271
        %vm277 = vcmp.eq.s32.totalorder %v267, %v271
        %vm278 = vcmp.eq.s32.totalorder %v266, %v275
        %vm279 = vcmp.eq.s32.totalorder %v267, %v275
        %v280 = vsel %vm276, 1, 0
        %v281 = vsel %vm277, 1, 0
        %v282 = vsel %vm278, 1, 0
        %v283 = vsel %vm279, 1, 0
        %v284 = vcvt.s32.f32 %v280
        %v285 = vcvt.s32.f32 %v281
        %v286 = vcvt.s32.f32 %v282
        %v287 = vcvt.s32.f32 %v283
        %288 = vxpose.xlu0.b32.start [1/16] %v284, 128
        %289 = vxpose.xlu0.b32.cont [2/16] %v285, 128
        %290 = vxpose.xlu0.b32.cont [3/16] 0.0, 128
        %291 = vxpose.xlu0.b32.cont [4/16] 0.0, 128
        %292 = vxpose.xlu0.b32.cont [5/16] 0.0, 128
        %293 = vxpose.xlu0.b32.cont [6/16] 0.0, 128
        %294 = vxpose.xlu0.b32.cont [7/16] 0.0, 128
        %295 = vxpose.xlu0.b32.cont [8/16] 0.0, 128
        %296 = vxpose.xlu0.b32.cont [9/16] 0.0, 128
        %297 = vxpose.xlu0.b32.cont [10/16] 0.0, 128
        %298 = vxpose.xlu0.b32.cont [11/16] 0.0, 128
        %299 = vxpose.xlu0.b32.cont [12/16] 0.0, 128
        %300 = vxpose.xlu0.b32.cont [13/16] 0.0, 128
        %301 = vxpose.xlu0.b32.cont [14/16] 0.0, 128
        %302 = vxpose.xlu0.b32.cont [15/16] 0.0, 128
        %303 = vxpose.xlu0.b32.end [16/16] 0.0, 128
        %v304 = vpop.trf.xlu0
        %v305 = vpop.trf.xlu0
        %v306 = vpop.trf.xlu0
        %v307 = vpop.trf.xlu0
        %v308 = vpop.trf.xlu0
        %v309 = vpop.trf.xlu0
        %v310 = vpop.trf.xlu0
        %v311 = vpop.trf.xlu0
        %v312 = vpop.trf.xlu0
        %v313 = vpop.trf.xlu0
        %v314 = vpop.trf.xlu0
        %v315 = vpop.trf.xlu0
        %v316 = vpop.trf.xlu0
        %v317 = vpop.trf.xlu0
        %v318 = vpop.trf.xlu0
        %v319 = vpop.trf.xlu0
        %vm320 = vcmask 130048
        %v322 = vsel %vm320, %v304, 0
        %v325 = vsel %vm320, %v305, 0
        %327 = vmatprep.subr.mxu0 0.0
        %328 = vmatpush1.msra.mxu0 0.0
        %329 = vmatprep.subr.mxu0 0.0
        %330 = vmatpush1.msra.mxu0 0.0
        %331 = vmatprep.subr.mxu0 0.0
        %332 = vmatpush1.msra.mxu0 0.0
        %333 = vmatprep.subr.mxu0 0.0
        %334 = vmatpush1.msra.mxu0 0.0
        %335 = vmatprep.subr.mxu0 0.0
        %336 = vmatpush1.msra.mxu0 0.0
        %337 = vmatprep.subr.mxu0 0.0
        %338 = vmatpush1.msra.mxu0 0.0
        %339 = vmatprep.subr.mxu0 0.0
        %340 = vmatpush1.msra.mxu0 0.0
        %341 = vmatprep.subr.mxu0 0.0
        %342 = vmatpush1.msra.mxu0 0.0
        %343 = vmatprep.subr.mxu0 0.0
        %344 = vmatpush1.msra.mxu0 0.0
        %345 = vmatprep.subr.mxu0 0.0
        %346 = vmatpush1.msra.mxu0 0.0
        %347 = vmatprep.subr.mxu0 0.0
        %348 = vmatpush1.msra.mxu0 0.0
        %349 = vmatprep.subr.mxu0 0.0
        %350 = vmatpush1.msra.mxu0 0.0
        %351 = vmatprep.subr.mxu0 0.0
        %352 = vmatpush1.msra.mxu0 0.0
        %353 = vmatprep.subr.mxu0 0.0
        %354 = vmatpush1.msra.mxu0 0.0
        %355 = vmatprep.subr.mxu0 0.0
        %v356 = vand.u32 %v260, 4294901760
        %357 = vmatpush1.msra.mxu0 %v356
        %358 = vmatprep.subr.mxu0 0.0
        %v359 = vand.u32 %v259, 4294901760
        %360 = vmatpush1.msra.mxu0 %v359
        %361 = vmatprep.subr.mxu0 0.0
        %362 = vmatpush2.msra.mxu0 0.0
        %363 = vmatprep.subr.mxu0 0.0
        %364 = vmatpush2.msra.mxu0 0.0
        %365 = vmatprep.subr.mxu0 0.0
        %366 = vmatpush2.msra.mxu0 0.0
        %367 = vmatprep.subr.mxu0 0.0
        %368 = vmatpush2.msra.mxu0 0.0
        %369 = vmatprep.subr.mxu0 0.0
        %370 = vmatpush2.msra.mxu0 0.0
        %371 = vmatprep.subr.mxu0 0.0
        %372 = vmatpush2.msra.mxu0 0.0
        %373 = vmatprep.subr.mxu0 0.0
        %374 = vmatpush2.msra.mxu0 0.0
        %375 = vmatprep.subr.mxu0 0.0
        %376 = vmatpush2.msra.mxu0 0.0
        %377 = vmatprep.subr.mxu0 0.0
        %378 = vmatpush2.msra.mxu0 0.0
        %379 = vmatprep.subr.mxu0 0.0
        %380 = vmatpush2.msra.mxu0 0.0
        %381 = vmatprep.subr.mxu0 0.0
        %382 = vmatpush2.msra.mxu0 0.0
        %383 = vmatprep.subr.mxu0 0.0
        %384 = vmatpush2.msra.mxu0 0.0
        %385 = vmatprep.subr.mxu0 0.0
        %386 = vmatpush2.msra.mxu0 0.0
        %387 = vmatprep.subr.mxu0 0.0
        %388 = vmatpush2.msra.mxu0 0.0
        %389 = vmatprep.subr.mxu0 0.0
        %390 = vmatpush2.msra.mxu0 0.0
        %391 = vmatprep.subr.mxu0 0.0
        %392 = vmatpush2.msra.mxu0 0.0
        %393 = vmatprep.mubr.f32.mxu0 0.0
        %v394 = vand.u32 %v322, 4294901760
        %v395 = vsub.f32 %v322, %v394
        %v396 = vand.u32 %v395, 4294901760
        %v397 = vsub.f32 %v395, %v396
        %v398 = vand.u32 %v397, 4294901760
        %399 = vmatmul.mubr.f32.gmra.mxu0 %v398
        %v400 = vpop.f32.mrf.mxu0
        %v401 = vadd.f32 0.0, %v400
        %v402 = vpop.f32.mrf.mxu0
        %403 = vmatprep.mubr.f32.mxu0 0.0
        %v404 = vand.u32 %v325, 4294901760
        %v405 = vsub.f32 %v325, %v404
        %v406 = vand.u32 %v405, 4294901760
        %v407 = vsub.f32 %v405, %v406
        %v408 = vand.u32 %v407, 4294901760
        %409 = vmatmul.mubr.f32.gmra.mxu0 %v408
        %v410 = vpop.f32.mrf.mxu0
        %v411 = vadd.f32 0.0, %v410
        %v412 = vpop.f32.mrf.mxu0
        %413 = vdwg.mxu0
        %414 = vmatprep.subr.mxu0 0.0
        %415 = vmatpush1.msra.mxu0 0.0
        %416 = vmatprep.subr.mxu0 0.0
        %417 = vmatpush1.msra.mxu0 0.0
        %418 = vmatprep.subr.mxu0 0.0
        %419 = vmatpush1.msra.mxu0 0.0
        %420 = vmatprep.subr.mxu0 0.0
        %421 = vmatpush1.msra.mxu0 0.0
        %422 = vmatprep.subr.mxu0 0.0
        %423 = vmatpush1.msra.mxu0 0.0
        %424 = vmatprep.subr.mxu0 0.0
        %425 = vmatpush1.msra.mxu0 0.0
        %426 = vmatprep.subr.mxu0 0.0
        %427 = vmatpush1.msra.mxu0 0.0
        %428 = vmatprep.subr.mxu0 0.0
        %429 = vmatpush1.msra.mxu0 0.0
        %430 = vmatprep.subr.mxu0 0.0
        %431 = vmatpush1.msra.mxu0 0.0
        %432 = vmatprep.subr.mxu0 0.0
        %433 = vmatpush1.msra.mxu0 0.0
        %434 = vmatprep.subr.mxu0 0.0
        %435 = vmatpush1.msra.mxu0 0.0
        %436 = vmatprep.subr.mxu0 0.0
        %437 = vmatpush1.msra.mxu0 0.0
        %438 = vmatprep.subr.mxu0 0.0
        %439 = vmatpush1.msra.mxu0 0.0
        %440 = vmatprep.subr.mxu0 0.0
        %441 = vmatpush1.msra.mxu0 0.0
        %442 = vmatprep.subr.mxu0 0.0
        %v443 = vand.u32 %v260, 4294901760
        %v444 = vsub.f32 %v260, %v443
        %v445 = vand.u32 %v444, 4294901760
        %v446 = vsub.f32 %v444, %v445
        %v447 = vand.u32 %v446, 4294901760
        %448 = vmatpush1.msra.mxu0 %v447
        %449 = vmatprep.subr.mxu0 0.0
        %v450 = vand.u32 %v259, 4294901760
        %v451 = vsub.f32 %v259, %v450
        %v452 = vand.u32 %v451, 4294901760
        %v453 = vsub.f32 %v451, %v452
        %v454 = vand.u32 %v453, 4294901760
        %455 = vmatpush1.msra.mxu0 %v454
        %456 = vmatprep.subr.mxu0 0.0
        %457 = vmatpush2.msra.mxu0 0.0
        %458 = vmatprep.subr.mxu0 0.0
        %459 = vmatpush2.msra.mxu0 0.0
        %460 = vmatprep.subr.mxu0 0.0
        %461 = vmatpush2.msra.mxu0 0.0
        %462 = vmatprep.subr.mxu0 0.0
        %463 = vmatpush2.msra.mxu0 0.0
        %464 = vmatprep.subr.mxu0 0.0
        %465 = vmatpush2.msra.mxu0 0.0
        %466 = vmatprep.subr.mxu0 0.0
        %467 = vmatpush2.msra.mxu0 0.0
        %468 = vmatprep.subr.mxu0 0.0
        %469 = vmatpush2.msra.mxu0 0.0
        %470 = vmatprep.subr.mxu0 0.0
        %471 = vmatpush2.msra.mxu0 0.0
        %472 = vmatprep.subr.mxu0 0.0
        %473 = vmatpush2.msra.mxu0 0.0
        %474 = vmatprep.subr.mxu0 0.0
        %475 = vmatpush2.msra.mxu0 0.0
        %476 = vmatprep.subr.mxu0 0.0
        %477 = vmatpush2.msra.mxu0 0.0
        %478 = vmatprep.subr.mxu0 0.0
        %479 = vmatpush2.msra.mxu0 0.0
        %480 = vmatprep.subr.mxu0 0.0
        %481 = vmatpush2.msra.mxu0 0.0
        %482 = vmatprep.subr.mxu0 0.0
        %483 = vmatpush2.msra.mxu0 0.0
        %484 = vmatprep.subr.mxu0 0.0
        %485 = vmatpush2.msra.mxu0 0.0
        %486 = vmatprep.subr.mxu0 0.0
        %487 = vmatpush2.msra.mxu0 0.0
        %488 = vmatprep.mubr.f32.mxu0 0.0
        %v489 = vand.u32 %v322, 4294901760
        %490 = vmatmul.mubr.f32.gmra.mxu0 %v489
        %v491 = vpop.f32.mrf.mxu0
        %v492 = vadd.f32 %v401, %v491
        %v493 = vpop.f32.mrf.mxu0
        %494 = vmatprep.mubr.f32.mxu0 0.0
        %v495 = vand.u32 %v325, 4294901760
        %496 = vmatmul.mubr.f32.gmra.mxu0 %v495
        %v497 = vpop.f32.mrf.mxu0
        %v498 = vadd.f32 %v411, %v497
        %v499 = vpop.f32.mrf.mxu0
        %500 = vdwg.mxu0
        %501 = vmatprep.subr.mxu0 0.0
        %502 = vmatpush1.msra.mxu0 0.0
        %503 = vmatprep.subr.mxu0 0.0
        %504 = vmatpush1.msra.mxu0 0.0
        %505 = vmatprep.subr.mxu0 0.0
        %506 = vmatpush1.msra.mxu0 0.0
        %507 = vmatprep.subr.mxu0 0.0
        %508 = vmatpush1.msra.mxu0 0.0
        %509 = vmatprep.subr.mxu0 0.0
        %510 = vmatpush1.msra.mxu0 0.0
        %511 = vmatprep.subr.mxu0 0.0
        %512 = vmatpush1.msra.mxu0 0.0
        %513 = vmatprep.subr.mxu0 0.0
        %514 = vmatpush1.msra.mxu0 0.0
        %515 = vmatprep.subr.mxu0 0.0
        %516 = vmatpush1.msra.mxu0 0.0
        %517 = vmatprep.subr.mxu0 0.0
        %518 = vmatpush1.msra.mxu0 0.0
        %519 = vmatprep.subr.mxu0 0.0
        %520 = vmatpush1.msra.mxu0 0.0
        %521 = vmatprep.subr.mxu0 0.0
        %522 = vmatpush1.msra.mxu0 0.0
        %523 = vmatprep.subr.mxu0 0.0
        %524 = vmatpush1.msra.mxu0 0.0
        %525 = vmatprep.subr.mxu0 0.0
        %526 = vmatpush1.msra.mxu0 0.0
        %527 = vmatprep.subr.mxu0 0.0
        %528 = vmatpush1.msra.mxu0 0.0
        %529 = vmatprep.subr.mxu0 0.0
        %v530 = vand.u32 %v260, 4294901760
        %v531 = vsub.f32 %v260, %v530
        %532 = vmatpush1.msra.mxu0 %v531
        %533 = vmatprep.subr.mxu0 0.0
        %v534 = vand.u32 %v259, 4294901760
        %v535 = vsub.f32 %v259, %v534
        %536 = vmatpush1.msra.mxu0 %v535
        %537 = vmatprep.subr.mxu0 0.0
        %538 = vmatpush2.msra.mxu0 0.0
        %539 = vmatprep.subr.mxu0 0.0
        %540 = vmatpush2.msra.mxu0 0.0
        %541 = vmatprep.subr.mxu0 0.0
        %542 = vmatpush2.msra.mxu0 0.0
        %543 = vmatprep.subr.mxu0 0.0
        %544 = vmatpush2.msra.mxu0 0.0
        %545 = vmatprep.subr.mxu0 0.0
        %546 = vmatpush2.msra.mxu0 0.0
        %547 = vmatprep.subr.mxu0 0.0
        %548 = vmatpush2.msra.mxu0 0.0
        %549 = vmatprep.subr.mxu0 0.0
        %550 = vmatpush2.msra.mxu0 0.0
        %551 = vmatprep.subr.mxu0 0.0
        %552 = vmatpush2.msra.mxu0 0.0
        %553 = vmatprep.subr.mxu0 0.0
        %554 = vmatpush2.msra.mxu0 0.0
        %555 = vmatprep.subr.mxu0 0.0
        %556 = vmatpush2.msra.mxu0 0.0
        %557 = vmatprep.subr.mxu0 0.0
        %558 = vmatpush2.msra.mxu0 0.0
        %559 = vmatprep.subr.mxu0 0.0
        %560 = vmatpush2.msra.mxu0 0.0
        %561 = vmatprep.subr.mxu0 0.0
        %562 = vmatpush2.msra.mxu0 0.0
        %563 = vmatprep.subr.mxu0 0.0
        %564 = vmatpush2.msra.mxu0 0.0
        %565 = vmatprep.subr.mxu0 0.0
        %566 = vmatpush2.msra.mxu0 0.0
        %567 = vmatprep.subr.mxu0 0.0
        %568 = vmatpush2.msra.mxu0 0.0
        %569 = vmatprep.mubr.f32.mxu0 0.0
        %v570 = vand.u32 %v322, 4294901760
        %v571 = vsub.f32 %v322, %v570
        %572 = vmatmul.mubr.f32.gmra.mxu0 %v571
        %v573 = vpop.f32.mrf.mxu0
        %v574 = vadd.f32 %v492, %v573
        %v575 = vpop.f32.mrf.mxu0
        %576 = vmatprep.mubr.f32.mxu0 0.0
        %v577 = vand.u32 %v325, 4294901760
        %v578 = vsub.f32 %v325, %v577
        %579 = vmatmul.mubr.f32.gmra.mxu0 %v578
        %v580 = vpop.f32.mrf.mxu0
        %v581 = vadd.f32 %v498, %v580
        %v582 = vpop.f32.mrf.mxu0
        %583 = vdwg.mxu0
        %584 = vmatprep.subr.mxu0 0.0
        %585 = vmatpush1.msra.mxu0 0.0
        %586 = vmatprep.subr.mxu0 0.0
        %587 = vmatpush1.msra.mxu0 0.0
        %588 = vmatprep.subr.mxu0 0.0
        %589 = vmatpush1.msra.mxu0 0.0
        %590 = vmatprep.subr.mxu0 0.0
        %591 = vmatpush1.msra.mxu0 0.0
        %592 = vmatprep.subr.mxu0 0.0
        %593 = vmatpush1.msra.mxu0 0.0
        %594 = vmatprep.subr.mxu0 0.0
        %595 = vmatpush1.msra.mxu0 0.0
        %596 = vmatprep.subr.mxu0 0.0
        %597 = vmatpush1.msra.mxu0 0.0
        %598 = vmatprep.subr.mxu0 0.0
        %599 = vmatpush1.msra.mxu0 0.0
        %600 = vmatprep.subr.mxu0 0.0
        %601 = vmatpush1.msra.mxu0 0.0
        %602 = vmatprep.subr.mxu0 0.0
        %603 = vmatpush1.msra.mxu0 0.0
        %604 = vmatprep.subr.mxu0 0.0
        %605 = vmatpush1.msra.mxu0 0.0
        %606 = vmatprep.subr.mxu0 0.0
        %607 = vmatpush1.msra.mxu0 0.0
        %608 = vmatprep.subr.mxu0 0.0
        %609 = vmatpush1.msra.mxu0 0.0
        %610 = vmatprep.subr.mxu0 0.0
        %611 = vmatpush1.msra.mxu0 0.0
        %612 = vmatprep.subr.mxu0 0.0
        %v613 = vand.u32 %v260, 4294901760
        %614 = vmatpush1.msra.mxu0 %v613
        %615 = vmatprep.subr.mxu0 0.0
        %v616 = vand.u32 %v259, 4294901760
        %617 = vmatpush1.msra.mxu0 %v616
        %618 = vmatprep.subr.mxu0 0.0
        %619 = vmatpush2.msra.mxu0 0.0
        %620 = vmatprep.subr.mxu0 0.0
        %621 = vmatpush2.msra.mxu0 0.0
        %622 = vmatprep.subr.mxu0 0.0
        %623 = vmatpush2.msra.mxu0 0.0
        %624 = vmatprep.subr.mxu0 0.0
        %625 = vmatpush2.msra.mxu0 0.0
        %626 = vmatprep.subr.mxu0 0.0
        %627 = vmatpush2.msra.mxu0 0.0
        %628 = vmatprep.subr.mxu0 0.0
        %629 = vmatpush2.msra.mxu0 0.0
        %630 = vmatprep.subr.mxu0 0.0
        %631 = vmatpush2.msra.mxu0 0.0
        %632 = vmatprep.subr.mxu0 0.0
        %633 = vmatpush2.msra.mxu0 0.0
        %634 = vmatprep.subr.mxu0 0.0
        %635 = vmatpush2.msra.mxu0 0.0
        %636 = vmatprep.subr.mxu0 0.0
        %637 = vmatpush2.msra.mxu0 0.0
        %638 = vmatprep.subr.mxu0 0.0
        %639 = vmatpush2.msra.mxu0 0.0
        %640 = vmatprep.subr.mxu0 0.0
        %641 = vmatpush2.msra.mxu0 0.0
        %642 = vmatprep.subr.mxu0 0.0
        %643 = vmatpush2.msra.mxu0 0.0
        %644 = vmatprep.subr.mxu0 0.0
        %645 = vmatpush2.msra.mxu0 0.0
        %646 = vmatprep.subr.mxu0 0.0
        %647 = vmatpush2.msra.mxu0 0.0
        %648 = vmatprep.subr.mxu0 0.0
        %649 = vmatpush2.msra.mxu0 0.0
        %650 = vmatprep.mubr.f32.mxu0 0.0
        %v651 = vand.u32 %v322, 4294901760
        %v652 = vsub.f32 %v322, %v651
        %v653 = vand.u32 %v652, 4294901760
        %654 = vmatmul.mubr.f32.gmra.mxu0 %v653
        %v655 = vpop.f32.mrf.mxu0
        %v656 = vadd.f32 %v574, %v655
        %v657 = vpop.f32.mrf.mxu0
        %658 = vmatprep.mubr.f32.mxu0 0.0
        %v659 = vand.u32 %v325, 4294901760
        %v660 = vsub.f32 %v325, %v659
        %v661 = vand.u32 %v660, 4294901760
        %662 = vmatmul.mubr.f32.gmra.mxu0 %v661
        %v663 = vpop.f32.mrf.mxu0
        %v664 = vadd.f32 %v581, %v663
        %v665 = vpop.f32.mrf.mxu0
        %666 = vdwg.mxu0
        %667 = vmatprep.subr.mxu0 0.0
        %668 = vmatpush1.msra.mxu0 0.0
        %669 = vmatprep.subr.mxu0 0.0
        %670 = vmatpush1.msra.mxu0 0.0
        %671 = vmatprep.subr.mxu0 0.0
        %672 = vmatpush1.msra.mxu0 0.0
        %673 = vmatprep.subr.mxu0 0.0
        %674 = vmatpush1.msra.mxu0 0.0
        %675 = vmatprep.subr.mxu0 0.0
        %676 = vmatpush1.msra.mxu0 0.0
        %677 = vmatprep.subr.mxu0 0.0
        %678 = vmatpush1.msra.mxu0 0.0
        %679 = vmatprep.subr.mxu0 0.0
        %680 = vmatpush1.msra.mxu0 0.0
        %681 = vmatprep.subr.mxu0 0.0
        %682 = vmatpush1.msra.mxu0 0.0
        %683 = vmatprep.subr.mxu0 0.0
        %684 = vmatpush1.msra.mxu0 0.0
        %685 = vmatprep.subr.mxu0 0.0
        %686 = vmatpush1.msra.mxu0 0.0
        %687 = vmatprep.subr.mxu0 0.0
        %688 = vmatpush1.msra.mxu0 0.0
        %689 = vmatprep.subr.mxu0 0.0
        %690 = vmatpush1.msra.mxu0 0.0
        %691 = vmatprep.subr.mxu0 0.0
        %692 = vmatpush1.msra.mxu0 0.0
        %693 = vmatprep.subr.mxu0 0.0
        %694 = vmatpush1.msra.mxu0 0.0
        %695 = vmatprep.subr.mxu0 0.0
        %v696 = vand.u32 %v260, 4294901760
        %v697 = vsub.f32 %v260, %v696
        %v698 = vand.u32 %v697, 4294901760
        %699 = vmatpush1.msra.mxu0 %v698
        %700 = vmatprep.subr.mxu0 0.0
        %v701 = vand.u32 %v259, 4294901760
        %v702 = vsub.f32 %v259, %v701
        %v703 = vand.u32 %v702, 4294901760
        %704 = vmatpush1.msra.mxu0 %v703
        %705 = vmatprep.subr.mxu0 0.0
        %706 = vmatpush2.msra.mxu0 0.0
        %707 = vmatprep.subr.mxu0 0.0
        %708 = vmatpush2.msra.mxu0 0.0
        %709 = vmatprep.subr.mxu0 0.0
        %710 = vmatpush2.msra.mxu0 0.0
        %711 = vmatprep.subr.mxu0 0.0
        %712 = vmatpush2.msra.mxu0 0.0
        %713 = vmatprep.subr.mxu0 0.0
        %714 = vmatpush2.msra.mxu0 0.0
        %715 = vmatprep.subr.mxu0 0.0
        %716 = vmatpush2.msra.mxu0 0.0
        %717 = vmatprep.subr.mxu0 0.0
        %718 = vmatpush2.msra.mxu0 0.0
        %719 = vmatprep.subr.mxu0 0.0
        %720 = vmatpush2.msra.mxu0 0.0
        %721 = vmatprep.subr.mxu0 0.0
        %722 = vmatpush2.msra.mxu0 0.0
        %723 = vmatprep.subr.mxu0 0.0
        %724 = vmatpush2.msra.mxu0 0.0
        %725 = vmatprep.subr.mxu0 0.0
        %726 = vmatpush2.msra.mxu0 0.0
        %727 = vmatprep.subr.mxu0 0.0
        %728 = vmatpush2.msra.mxu0 0.0
        %729 = vmatprep.subr.mxu0 0.0
        %730 = vmatpush2.msra.mxu0 0.0
        %731 = vmatprep.subr.mxu0 0.0
        %732 = vmatpush2.msra.mxu0 0.0
        %733 = vmatprep.subr.mxu0 0.0
        %734 = vmatpush2.msra.mxu0 0.0
        %735 = vmatprep.subr.mxu0 0.0
        %736 = vmatpush2.msra.mxu0 0.0
        %737 = vmatprep.mubr.f32.mxu0 0.0
        %v738 = vand.u32 %v322, 4294901760
        %739 = vmatmul.mubr.f32.gmra.mxu0 %v738
        %v740 = vpop.f32.mrf.mxu0
        %v741 = vadd.f32 %v656, %v740
        %v742 = vpop.f32.mrf.mxu0
        %743 = vmatprep.mubr.f32.mxu0 0.0
        %v744 = vand.u32 %v325, 4294901760
        %745 = vmatmul.mubr.f32.gmra.mxu0 %v744
        %v746 = vpop.f32.mrf.mxu0
        %v747 = vadd.f32 %v664, %v746
        %v748 = vpop.f32.mrf.mxu0
        %749 = vdwg.mxu0
        %750 = vmatprep.subr.mxu0 0.0
        %751 = vmatpush1.msra.mxu0 0.0
        %752 = vmatprep.subr.mxu0 0.0
        %753 = vmatpush1.msra.mxu0 0.0
        %754 = vmatprep.subr.mxu0 0.0
        %755 = vmatpush1.msra.mxu0 0.0
        %756 = vmatprep.subr.mxu0 0.0
        %757 = vmatpush1.msra.mxu0 0.0
        %758 = vmatprep.subr.mxu0 0.0
        %759 = vmatpush1.msra.mxu0 0.0
        %760 = vmatprep.subr.mxu0 0.0
        %761 = vmatpush1.msra.mxu0 0.0
        %762 = vmatprep.subr.mxu0 0.0
        %763 = vmatpush1.msra.mxu0 0.0
        %764 = vmatprep.subr.mxu0 0.0
        %765 = vmatpush1.msra.mxu0 0.0
        %766 = vmatprep.subr.mxu0 0.0
        %767 = vmatpush1.msra.mxu0 0.0
        %768 = vmatprep.subr.mxu0 0.0
        %769 = vmatpush1.msra.mxu0 0.0
        %770 = vmatprep.subr.mxu0 0.0
        %771 = vmatpush1.msra.mxu0 0.0
        %772 = vmatprep.subr.mxu0 0.0
        %773 = vmatpush1.msra.mxu0 0.0
        %774 = vmatprep.subr.mxu0 0.0
        %775 = vmatpush1.msra.mxu0 0.0
        %776 = vmatprep.subr.mxu0 0.0
        %777 = vmatpush1.msra.mxu0 0.0
        %778 = vmatprep.subr.mxu0 0.0
        %v779 = vand.u32 %v260, 4294901760
        %780 = vmatpush1.msra.mxu0 %v779
        %781 = vmatprep.subr.mxu0 0.0
        %v782 = vand.u32 %v259, 4294901760
        %783 = vmatpush1.msra.mxu0 %v782
        %784 = vmatprep.subr.mxu0 0.0
        %785 = vmatpush2.msra.mxu0 0.0
        %786 = vmatprep.subr.mxu0 0.0
        %787 = vmatpush2.msra.mxu0 0.0
        %788 = vmatprep.subr.mxu0 0.0
        %789 = vmatpush2.msra.mxu0 0.0
        %790 = vmatprep.subr.mxu0 0.0
        %791 = vmatpush2.msra.mxu0 0.0
        %792 = vmatprep.subr.mxu0 0.0
        %793 = vmatpush2.msra.mxu0 0.0
        %794 = vmatprep.subr.mxu0 0.0
        %795 = vmatpush2.msra.mxu0 0.0
        %796 = vmatprep.subr.mxu0 0.0
        %797 = vmatpush2.msra.mxu0 0.0
        %798 = vmatprep.subr.mxu0 0.0
        %799 = vmatpush2.msra.mxu0 0.0
        %800 = vmatprep.subr.mxu0 0.0
        %801 = vmatpush2.msra.mxu0 0.0
        %802 = vmatprep.subr.mxu0 0.0
        %803 = vmatpush2.msra.mxu0 0.0
        %804 = vmatprep.subr.mxu0 0.0
        %805 = vmatpush2.msra.mxu0 0.0
        %806 = vmatprep.subr.mxu0 0.0
        %807 = vmatpush2.msra.mxu0 0.0
        %808 = vmatprep.subr.mxu0 0.0
        %809 = vmatpush2.msra.mxu0 0.0
        %810 = vmatprep.subr.mxu0 0.0
        %811 = vmatpush2.msra.mxu0 0.0
        %812 = vmatprep.subr.mxu0 0.0
        %813 = vmatpush2.msra.mxu0 0.0
        %814 = vmatprep.subr.mxu0 0.0
        %815 = vmatpush2.msra.mxu0 0.0
        %816 = vmatprep.mubr.f32.mxu0 0.0
        %v817 = vand.u32 %v322, 4294901760
        %818 = vmatmul.mubr.f32.gmra.mxu0 %v817
        %v819 = vpop.f32.mrf.mxu0
        %v820 = vadd.f32 %v741, %v819
        %v821 = vpop.f32.mrf.mxu0
        %822 = vmatprep.mubr.f32.mxu0 0.0
        %v823 = vand.u32 %v325, 4294901760
        %824 = vmatmul.mubr.f32.gmra.mxu0 %v823
        %v825 = vpop.f32.mrf.mxu0
        %v826 = vadd.f32 %v747, %v825
        %v827 = vpop.f32.mrf.mxu0
        %828 = vdwg.mxu0
        %829 = vxpose.xlu0.b32.start [1/16] %v286, 128
        %830 = vxpose.xlu0.b32.cont [2/16] %v287, 128
        %831 = vxpose.xlu0.b32.cont [3/16] 0.0, 128
        %832 = vxpose.xlu0.b32.cont [4/16] 0.0, 128
        %833 = vxpose.xlu0.b32.cont [5/16] 0.0, 128
        %834 = vxpose.xlu0.b32.cont [6/16] 0.0, 128
        %835 = vxpose.xlu0.b32.cont [7/16] 0.0, 128
        %836 = vxpose.xlu0.b32.cont [8/16] 0.0, 128
        %837 = vxpose.xlu0.b32.cont [9/16] 0.0, 128
        %838 = vxpose.xlu0.b32.cont [10/16] 0.0, 128
        %839 = vxpose.xlu0.b32.cont [11/16] 0.0, 128
        %840 = vxpose.xlu0.b32.cont [12/16] 0.0, 128
        %841 = vxpose.xlu0.b32.cont [13/16] 0.0, 128
        %842 = vxpose.xlu0.b32.cont [14/16] 0.0, 128
        %843 = vxpose.xlu0.b32.cont [15/16] 0.0, 128
        %844 = vxpose.xlu0.b32.end [16/16] 0.0, 128
        %v845 = vpop.trf.xlu0
        %v846 = vpop.trf.xlu0
        %v847 = vpop.trf.xlu0
        %v848 = vpop.trf.xlu0
        %v849 = vpop.trf.xlu0
        %v850 = vpop.trf.xlu0
        %v851 = vpop.trf.xlu0
        %v852 = vpop.trf.xlu0
        %v853 = vpop.trf.xlu0
        %v854 = vpop.trf.xlu0
        %v855 = vpop.trf.xlu0
        %v856 = vpop.trf.xlu0
        %v857 = vpop.trf.xlu0
        %v858 = vpop.trf.xlu0
        %v859 = vpop.trf.xlu0
        %v860 = vpop.trf.xlu0
        %v862 = vsel %vm320, %v845, 0
        %v865 = vsel %vm320, %v846, 0
        %867 = vmatprep.subr.mxu0 0.0
        %868 = vmatpush1.msra.mxu0 0.0
        %869 = vmatprep.subr.mxu0 0.0
        %870 = vmatpush1.msra.mxu0 0.0
        %871 = vmatprep.subr.mxu0 0.0
        %872 = vmatpush1.msra.mxu0 0.0
        %873 = vmatprep.subr.mxu0 0.0
        %874 = vmatpush1.msra.mxu0 0.0
        %875 = vmatprep.subr.mxu0 0.0
        %876 = vmatpush1.msra.mxu0 0.0
        %877 = vmatprep.subr.mxu0 0.0
        %878 = vmatpush1.msra.mxu0 0.0
        %879 = vmatprep.subr.mxu0 0.0
        %880 = vmatpush1.msra.mxu0 0.0
        %881 = vmatprep.subr.mxu0 0.0
        %882 = vmatpush1.msra.mxu0 0.0
        %883 = vmatprep.subr.mxu0 0.0
        %884 = vmatpush1.msra.mxu0 0.0
        %885 = vmatprep.subr.mxu0 0.0
        %886 = vmatpush1.msra.mxu0 0.0
        %887 = vmatprep.subr.mxu0 0.0
        %888 = vmatpush1.msra.mxu0 0.0
        %889 = vmatprep.subr.mxu0 0.0
        %890 = vmatpush1.msra.mxu0 0.0
        %891 = vmatprep.subr.mxu0 0.0
        %892 = vmatpush1.msra.mxu0 0.0
        %893 = vmatprep.subr.mxu0 0.0
        %894 = vmatpush1.msra.mxu0 0.0
        %895 = vmatprep.subr.mxu0 0.0
        %v896 = vand.u32 %v262, 4294901760
        %897 = vmatpush1.msra.mxu0 %v896
        %898 = vmatprep.subr.mxu0 0.0
        %v899 = vand.u32 %v261, 4294901760
        %900 = vmatpush1.msra.mxu0 %v899
        %901 = vmatprep.subr.mxu0 0.0
        %902 = vmatpush2.msra.mxu0 0.0
        %903 = vmatprep.subr.mxu0 0.0
        %904 = vmatpush2.msra.mxu0 0.0
        %905 = vmatprep.subr.mxu0 0.0
        %906 = vmatpush2.msra.mxu0 0.0
        %907 = vmatprep.subr.mxu0 0.0
        %908 = vmatpush2.msra.mxu0 0.0
        %909 = vmatprep.subr.mxu0 0.0
        %910 = vmatpush2.msra.mxu0 0.0
        %911 = vmatprep.subr.mxu0 0.0
        %912 = vmatpush2.msra.mxu0 0.0
        %913 = vmatprep.subr.mxu0 0.0
        %914 = vmatpush2.msra.mxu0 0.0
        %915 = vmatprep.subr.mxu0 0.0
        %916 = vmatpush2.msra.mxu0 0.0
        %917 = vmatprep.subr.mxu0 0.0
        %918 = vmatpush2.msra.mxu0 0.0
        %919 = vmatprep.subr.mxu0 0.0
        %920 = vmatpush2.msra.mxu0 0.0
        %921 = vmatprep.subr.mxu0 0.0
        %922 = vmatpush2.msra.mxu0 0.0
        %923 = vmatprep.subr.mxu0 0.0
        %924 = vmatpush2.msra.mxu0 0.0
        %925 = vmatprep.subr.mxu0 0.0
        %926 = vmatpush2.msra.mxu0 0.0
        %927 = vmatprep.subr.mxu0 0.0
        %928 = vmatpush2.msra.mxu0 0.0
        %929 = vmatprep.subr.mxu0 0.0
        %930 = vmatpush2.msra.mxu0 0.0
        %931 = vmatprep.subr.mxu0 0.0
        %932 = vmatpush2.msra.mxu0 0.0
        %933 = vmatprep.mubr.f32.mxu0 0.0
        %v934 = vand.u32 %v862, 4294901760
        %v935 = vsub.f32 %v862, %v934
        %v936 = vand.u32 %v935, 4294901760
        %v937 = vsub.f32 %v935, %v936
        %v938 = vand.u32 %v937, 4294901760
        %939 = vmatmul.mubr.f32.gmra.mxu0 %v938
        %v940 = vpop.f32.mrf.mxu0
        %v941 = vadd.f32 0.0, %v940
        %v942 = vpop.f32.mrf.mxu0
        %943 = vmatprep.mubr.f32.mxu0 0.0
        %v944 = vand.u32 %v865, 4294901760
        %v945 = vsub.f32 %v865, %v944
        %v946 = vand.u32 %v945, 4294901760
        %v947 = vsub.f32 %v945, %v946
        %v948 = vand.u32 %v947, 4294901760
        %949 = vmatmul.mubr.f32.gmra.mxu0 %v948
        %v950 = vpop.f32.mrf.mxu0
        %v951 = vadd.f32 0.0, %v950
        %v952 = vpop.f32.mrf.mxu0
        %953 = vdwg.mxu0
        %954 = vmatprep.subr.mxu0 0.0
        %955 = vmatpush1.msra.mxu0 0.0
        %956 = vmatprep.subr.mxu0 0.0
        %957 = vmatpush1.msra.mxu0 0.0
        %958 = vmatprep.subr.mxu0 0.0
        %959 = vmatpush1.msra.mxu0 0.0
        %960 = vmatprep.subr.mxu0 0.0
        %961 = vmatpush1.msra.mxu0 0.0
        %962 = vmatprep.subr.mxu0 0.0
        %963 = vmatpush1.msra.mxu0 0.0
        %964 = vmatprep.subr.mxu0 0.0
        %965 = vmatpush1.msra.mxu0 0.0
        %966 = vmatprep.subr.mxu0 0.0
        %967 = vmatpush1.msra.mxu0 0.0
        %968 = vmatprep.subr.mxu0 0.0
        %969 = vmatpush1.msra.mxu0 0.0
        %970 = vmatprep.subr.mxu0 0.0
        %971 = vmatpush1.msra.mxu0 0.0
        %972 = vmatprep.subr.mxu0 0.0
        %973 = vmatpush1.msra.mxu0 0.0
        %974 = vmatprep.subr.mxu0 0.0
        %975 = vmatpush1.msra.mxu0 0.0
        %976 = vmatprep.subr.mxu0 0.0
        %977 = vmatpush1.msra.mxu0 0.0
        %978 = vmatprep.subr.mxu0 0.0
        %979 = vmatpush1.msra.mxu0 0.0
        %980 = vmatprep.subr.mxu0 0.0
        %981 = vmatpush1.msra.mxu0 0.0
        %982 = vmatprep.subr.mxu0 0.0
        %v983 = vand.u32 %v262, 4294901760
        %v984 = vsub.f32 %v262, %v983
        %v985 = vand.u32 %v984, 4294901760
        %v986 = vsub.f32 %v984, %v985
        %v987 = vand.u32 %v986, 4294901760
        %988 = vmatpush1.msra.mxu0 %v987
        %989 = vmatprep.subr.mxu0 0.0
        %v990 = vand.u32 %v261, 4294901760
        %v991 = vsub.f32 %v261, %v990
        %v992 = vand.u32 %v991, 4294901760
        %v993 = vsub.f32 %v991, %v992
        %v994 = vand.u32 %v993, 4294901760
        %995 = vmatpush1.msra.mxu0 %v994
        %996 = vmatprep.subr.mxu0 0.0
        %997 = vmatpush2.msra.mxu0 0.0
        %998 = vmatprep.subr.mxu0 0.0
        %999 = vmatpush2.msra.mxu0 0.0
        %1000 = vmatprep.subr.mxu0 0.0
        %1001 = vmatpush2.msra.mxu0 0.0
        %1002 = vmatprep.subr.mxu0 0.0
        %1003 = vmatpush2.msra.mxu0 0.0
        %1004 = vmatprep.subr.mxu0 0.0
        %1005 = vmatpush2.msra.mxu0 0.0
        %1006 = vmatprep.subr.mxu0 0.0
        %1007 = vmatpush2.msra.mxu0 0.0
        %1008 = vmatprep.subr.mxu0 0.0
        %1009 = vmatpush2.msra.mxu0 0.0
        %1010 = vmatprep.subr.mxu0 0.0
        %1011 = vmatpush2.msra.mxu0 0.0
        %1012 = vmatprep.subr.mxu0 0.0
        %1013 = vmatpush2.msra.mxu0 0.0
        %1014 = vmatprep.subr.mxu0 0.0
        %1015 = vmatpush2.msra.mxu0 0.0
        %1016 = vmatprep.subr.mxu0 0.0
        %1017 = vmatpush2.msra.mxu0 0.0
        %1018 = vmatprep.subr.mxu0 0.0
        %1019 = vmatpush2.msra.mxu0 0.0
        %1020 = vmatprep.subr.mxu0 0.0
        %1021 = vmatpush2.msra.mxu0 0.0
        %1022 = vmatprep.subr.mxu0 0.0
        %1023 = vmatpush2.msra.mxu0 0.0
        %1024 = vmatprep.subr.mxu0 0.0
        %1025 = vmatpush2.msra.mxu0 0.0
        %1026 = vmatprep.subr.mxu0 0.0
        %1027 = vmatpush2.msra.mxu0 0.0
        %1028 = vmatprep.mubr.f32.mxu0 0.0
        %v1029 = vand.u32 %v862, 4294901760
        %1030 = vmatmul.mubr.f32.gmra.mxu0 %v1029
        %v1031 = vpop.f32.mrf.mxu0
        %v1032 = vadd.f32 %v941, %v1031
        %v1033 = vpop.f32.mrf.mxu0
        %1034 = vmatprep.mubr.f32.mxu0 0.0
        %v1035 = vand.u32 %v865, 4294901760
        %1036 = vmatmul.mubr.f32.gmra.mxu0 %v1035
        %v1037 = vpop.f32.mrf.mxu0
        %v1038 = vadd.f32 %v951, %v1037
        %v1039 = vpop.f32.mrf.mxu0
        %1040 = vdwg.mxu0
        %1041 = vmatprep.subr.mxu0 0.0
        %1042 = vmatpush1.msra.mxu0 0.0
        %1043 = vmatprep.subr.mxu0 0.0
        %1044 = vmatpush1.msra.mxu0 0.0
        %1045 = vmatprep.subr.mxu0 0.0
        %1046 = vmatpush1.msra.mxu0 0.0
        %1047 = vmatprep.subr.mxu0 0.0
        %1048 = vmatpush1.msra.mxu0 0.0
        %1049 = vmatprep.subr.mxu0 0.0
        %1050 = vmatpush1.msra.mxu0 0.0
        %1051 = vmatprep.subr.mxu0 0.0
        %1052 = vmatpush1.msra.mxu0 0.0
        %1053 = vmatprep.subr.mxu0 0.0
        %1054 = vmatpush1.msra.mxu0 0.0
        %1055 = vmatprep.subr.mxu0 0.0
        %1056 = vmatpush1.msra.mxu0 0.0
        %1057 = vmatprep.subr.mxu0 0.0
        %1058 = vmatpush1.msra.mxu0 0.0
        %1059 = vmatprep.subr.mxu0 0.0
        %1060 = vmatpush1.msra.mxu0 0.0
        %1061 = vmatprep.subr.mxu0 0.0
        %1062 = vmatpush1.msra.mxu0 0.0
        %1063 = vmatprep.subr.mxu0 0.0
        %1064 = vmatpush1.msra.mxu0 0.0
        %1065 = vmatprep.subr.mxu0 0.0
        %1066 = vmatpush1.msra.mxu0 0.0
        %1067 = vmatprep.subr.mxu0 0.0
        %1068 = vmatpush1.msra.mxu0 0.0
        %1069 = vmatprep.subr.mxu0 0.0
        %v1070 = vand.u32 %v262, 4294901760
        %v1071 = vsub.f32 %v262, %v1070
        %1072 = vmatpush1.msra.mxu0 %v1071
        %1073 = vmatprep.subr.mxu0 0.0
        %v1074 = vand.u32 %v261, 4294901760
        %v1075 = vsub.f32 %v261, %v1074
        %1076 = vmatpush1.msra.mxu0 %v1075
        %1077 = vmatprep.subr.mxu0 0.0
        %1078 = vmatpush2.msra.mxu0 0.0
        %1079 = vmatprep.subr.mxu0 0.0
        %1080 = vmatpush2.msra.mxu0 0.0
        %1081 = vmatprep.subr.mxu0 0.0
        %1082 = vmatpush2.msra.mxu0 0.0
        %1083 = vmatprep.subr.mxu0 0.0
        %1084 = vmatpush2.msra.mxu0 0.0
        %1085 = vmatprep.subr.mxu0 0.0
        %1086 = vmatpush2.msra.mxu0 0.0
        %1087 = vmatprep.subr.mxu0 0.0
        %1088 = vmatpush2.msra.mxu0 0.0
        %1089 = vmatprep.subr.mxu0 0.0
        %1090 = vmatpush2.msra.mxu0 0.0
        %1091 = vmatprep.subr.mxu0 0.0
        %1092 = vmatpush2.msra.mxu0 0.0
        %1093 = vmatprep.subr.mxu0 0.0
        %1094 = vmatpush2.msra.mxu0 0.0
        %1095 = vmatprep.subr.mxu0 0.0
        %1096 = vmatpush2.msra.mxu0 0.0
        %1097 = vmatprep.subr.mxu0 0.0
        %1098 = vmatpush2.msra.mxu0 0.0
        %1099 = vmatprep.subr.mxu0 0.0
        %1100 = vmatpush2.msra.mxu0 0.0
        %1101 = vmatprep.subr.mxu0 0.0
        %1102 = vmatpush2.msra.mxu0 0.0
        %1103 = vmatprep.subr.mxu0 0.0
        %1104 = vmatpush2.msra.mxu0 0.0
        %1105 = vmatprep.subr.mxu0 0.0
        %1106 = vmatpush2.msra.mxu0 0.0
        %1107 = vmatprep.subr.mxu0 0.0
        %1108 = vmatpush2.msra.mxu0 0.0
        %1109 = vmatprep.mubr.f32.mxu0 0.0
        %v1110 = vand.u32 %v862, 4294901760
        %v1111 = vsub.f32 %v862, %v1110
        %1112 = vmatmul.mubr.f32.gmra.mxu0 %v1111
        %v1113 = vpop.f32.mrf.mxu0
        %v1114 = vadd.f32 %v1032, %v1113
        %v1115 = vpop.f32.mrf.mxu0
        %1116 = vmatprep.mubr.f32.mxu0 0.0
        %v1117 = vand.u32 %v865, 4294901760
        %v1118 = vsub.f32 %v865, %v1117
        %1119 = vmatmul.mubr.f32.gmra.mxu0 %v1118
        %v1120 = vpop.f32.mrf.mxu0
        %v1121 = vadd.f32 %v1038, %v1120
        %v1122 = vpop.f32.mrf.mxu0
        %1123 = vdwg.mxu0
        %1124 = vmatprep.subr.mxu0 0.0
        %1125 = vmatpush1.msra.mxu0 0.0
        %1126 = vmatprep.subr.mxu0 0.0
        %1127 = vmatpush1.msra.mxu0 0.0
        %1128 = vmatprep.subr.mxu0 0.0
        %1129 = vmatpush1.msra.mxu0 0.0
        %1130 = vmatprep.subr.mxu0 0.0
        %1131 = vmatpush1.msra.mxu0 0.0
        %1132 = vmatprep.subr.mxu0 0.0
        %1133 = vmatpush1.msra.mxu0 0.0
        %1134 = vmatprep.subr.mxu0 0.0
        %1135 = vmatpush1.msra.mxu0 0.0
        %1136 = vmatprep.subr.mxu0 0.0
        %1137 = vmatpush1.msra.mxu0 0.0
        %1138 = vmatprep.subr.mxu0 0.0
        %1139 = vmatpush1.msra.mxu0 0.0
        %1140 = vmatprep.subr.mxu0 0.0
        %1141 = vmatpush1.msra.mxu0 0.0
        %1142 = vmatprep.subr.mxu0 0.0
        %1143 = vmatpush1.msra.mxu0 0.0
        %1144 = vmatprep.subr.mxu0 0.0
        %1145 = vmatpush1.msra.mxu0 0.0
        %1146 = vmatprep.subr.mxu0 0.0
        %1147 = vmatpush1.msra.mxu0 0.0
        %1148 = vmatprep.subr.mxu0 0.0
        %1149 = vmatpush1.msra.mxu0 0.0
        %1150 = vmatprep.subr.mxu0 0.0
        %1151 = vmatpush1.msra.mxu0 0.0
        %1152 = vmatprep.subr.mxu0 0.0
        %v1153 = vand.u32 %v262, 4294901760
        %1154 = vmatpush1.msra.mxu0 %v1153
        %1155 = vmatprep.subr.mxu0 0.0
        %v1156 = vand.u32 %v261, 4294901760
        %1157 = vmatpush1.msra.mxu0 %v1156
        %1158 = vmatprep.subr.mxu0 0.0
        %1159 = vmatpush2.msra.mxu0 0.0
        %1160 = vmatprep.subr.mxu0 0.0
        %1161 = vmatpush2.msra.mxu0 0.0
        %1162 = vmatprep.subr.mxu0 0.0
        %1163 = vmatpush2.msra.mxu0 0.0
        %1164 = vmatprep.subr.mxu0 0.0
        %1165 = vmatpush2.msra.mxu0 0.0
        %1166 = vmatprep.subr.mxu0 0.0
        %1167 = vmatpush2.msra.mxu0 0.0
        %1168 = vmatprep.subr.mxu0 0.0
        %1169 = vmatpush2.msra.mxu0 0.0
        %1170 = vmatprep.subr.mxu0 0.0
        %1171 = vmatpush2.msra.mxu0 0.0
        %1172 = vmatprep.subr.mxu0 0.0
        %1173 = vmatpush2.msra.mxu0 0.0
        %1174 = vmatprep.subr.mxu0 0.0
        %1175 = vmatpush2.msra.mxu0 0.0
        %1176 = vmatprep.subr.mxu0 0.0
        %1177 = vmatpush2.msra.mxu0 0.0
        %1178 = vmatprep.subr.mxu0 0.0
        %1179 = vmatpush2.msra.mxu0 0.0
        %1180 = vmatprep.subr.mxu0 0.0
        %1181 = vmatpush2.msra.mxu0 0.0
        %1182 = vmatprep.subr.mxu0 0.0
        %1183 = vmatpush2.msra.mxu0 0.0
        %1184 = vmatprep.subr.mxu0 0.0
        %1185 = vmatpush2.msra.mxu0 0.0
        %1186 = vmatprep.subr.mxu0 0.0
        %1187 = vmatpush2.msra.mxu0 0.0
        %1188 = vmatprep.subr.mxu0 0.0
        %1189 = vmatpush2.msra.mxu0 0.0
        %1190 = vmatprep.mubr.f32.mxu0 0.0
        %v1191 = vand.u32 %v862, 4294901760
        %v1192 = vsub.f32 %v862, %v1191
        %v1193 = vand.u32 %v1192, 4294901760
        %1194 = vmatmul.mubr.f32.gmra.mxu0 %v1193
        %v1195 = vpop.f32.mrf.mxu0
        %v1196 = vadd.f32 %v1114, %v1195
        %v1197 = vpop.f32.mrf.mxu0
        %1198 = vmatprep.mubr.f32.mxu0 0.0
        %v1199 = vand.u32 %v865, 4294901760
        %v1200 = vsub.f32 %v865, %v1199
        %v1201 = vand.u32 %v1200, 4294901760
        %1202 = vmatmul.mubr.f32.gmra.mxu0 %v1201
        %v1203 = vpop.f32.mrf.mxu0
        %v1204 = vadd.f32 %v1121, %v1203
        %v1205 = vpop.f32.mrf.mxu0
        %1206 = vdwg.mxu0
        %1207 = vmatprep.subr.mxu0 0.0
        %1208 = vmatpush1.msra.mxu0 0.0
        %1209 = vmatprep.subr.mxu0 0.0
        %1210 = vmatpush1.msra.mxu0 0.0
        %1211 = vmatprep.subr.mxu0 0.0
        %1212 = vmatpush1.msra.mxu0 0.0
        %1213 = vmatprep.subr.mxu0 0.0
        %1214 = vmatpush1.msra.mxu0 0.0
        %1215 = vmatprep.subr.mxu0 0.0
        %1216 = vmatpush1.msra.mxu0 0.0
        %1217 = vmatprep.subr.mxu0 0.0
        %1218 = vmatpush1.msra.mxu0 0.0
        %1219 = vmatprep.subr.mxu0 0.0
        %1220 = vmatpush1.msra.mxu0 0.0
        %1221 = vmatprep.subr.mxu0 0.0
        %1222 = vmatpush1.msra.mxu0 0.0
        %1223 = vmatprep.subr.mxu0 0.0
        %1224 = vmatpush1.msra.mxu0 0.0
        %1225 = vmatprep.subr.mxu0 0.0
        %1226 = vmatpush1.msra.mxu0 0.0
        %1227 = vmatprep.subr.mxu0 0.0
        %1228 = vmatpush1.msra.mxu0 0.0
        %1229 = vmatprep.subr.mxu0 0.0
        %1230 = vmatpush1.msra.mxu0 0.0
        %1231 = vmatprep.subr.mxu0 0.0
        %1232 = vmatpush1.msra.mxu0 0.0
        %1233 = vmatprep.subr.mxu0 0.0
        %1234 = vmatpush1.msra.mxu0 0.0
        %1235 = vmatprep.subr.mxu0 0.0
        %v1236 = vand.u32 %v262, 4294901760
        %v1237 = vsub.f32 %v262, %v1236
        %v1238 = vand.u32 %v1237, 4294901760
        %1239 = vmatpush1.msra.mxu0 %v1238
        %1240 = vmatprep.subr.mxu0 0.0
        %v1241 = vand.u32 %v261, 4294901760
        %v1242 = vsub.f32 %v261, %v1241
        %v1243 = vand.u32 %v1242, 4294901760
        %1244 = vmatpush1.msra.mxu0 %v1243
        %1245 = vmatprep.subr.mxu0 0.0
        %1246 = vmatpush2.msra.mxu0 0.0
        %1247 = vmatprep.subr.mxu0 0.0
        %1248 = vmatpush2.msra.mxu0 0.0
        %1249 = vmatprep.subr.mxu0 0.0
        %1250 = vmatpush2.msra.mxu0 0.0
        %1251 = vmatprep.subr.mxu0 0.0
        %1252 = vmatpush2.msra.mxu0 0.0
        %1253 = vmatprep.subr.mxu0 0.0
        %1254 = vmatpush2.msra.mxu0 0.0
        %1255 = vmatprep.subr.mxu0 0.0
        %1256 = vmatpush2.msra.mxu0 0.0
        %1257 = vmatprep.subr.mxu0 0.0
        %1258 = vmatpush2.msra.mxu0 0.0
        %1259 = vmatprep.subr.mxu0 0.0
        %1260 = vmatpush2.msra.mxu0 0.0
        %1261 = vmatprep.subr.mxu0 0.0
        %1262 = vmatpush2.msra.mxu0 0.0
        %1263 = vmatprep.subr.mxu0 0.0
        %1264 = vmatpush2.msra.mxu0 0.0
        %1265 = vmatprep.subr.mxu0 0.0
        %1266 = vmatpush2.msra.mxu0 0.0
        %1267 = vmatprep.subr.mxu0 0.0
        %1268 = vmatpush2.msra.mxu0 0.0
        %1269 = vmatprep.subr.mxu0 0.0
        %1270 = vmatpush2.msra.mxu0 0.0
        %1271 = vmatprep.subr.mxu0 0.0
        %1272 = vmatpush2.msra.mxu0 0.0
        %1273 = vmatprep.subr.mxu0 0.0
        %1274 = vmatpush2.msra.mxu0 0.0
        %1275 = vmatprep.subr.mxu0 0.0
        %1276 = vmatpush2.msra.mxu0 0.0
        %1277 = vmatprep.mubr.f32.mxu0 0.0
        %v1278 = vand.u32 %v862, 4294901760
        %1279 = vmatmul.mubr.f32.gmra.mxu0 %v1278
        %v1280 = vpop.f32.mrf.mxu0
        %v1281 = vadd.f32 %v1196, %v1280
        %v1282 = vpop.f32.mrf.mxu0
        %1283 = vmatprep.mubr.f32.mxu0 0.0
        %v1284 = vand.u32 %v865, 4294901760
        %1285 = vmatmul.mubr.f32.gmra.mxu0 %v1284
        %v1286 = vpop.f32.mrf.mxu0
        %v1287 = vadd.f32 %v1204, %v1286
        %v1288 = vpop.f32.mrf.mxu0
        %1289 = vdwg.mxu0
        %1290 = vmatprep.subr.mxu0 0.0
        %1291 = vmatpush1.msra.mxu0 0.0
        %1292 = vmatprep.subr.mxu0 0.0
        %1293 = vmatpush1.msra.mxu0 0.0
        %1294 = vmatprep.subr.mxu0 0.0
        %1295 = vmatpush1.msra.mxu0 0.0
        %1296 = vmatprep.subr.mxu0 0.0
        %1297 = vmatpush1.msra.mxu0 0.0
        %1298 = vmatprep.subr.mxu0 0.0
        %1299 = vmatpush1.msra.mxu0 0.0
        %1300 = vmatprep.subr.mxu0 0.0
        %1301 = vmatpush1.msra.mxu0 0.0
        %1302 = vmatprep.subr.mxu0 0.0
        %1303 = vmatpush1.msra.mxu0 0.0
        %1304 = vmatprep.subr.mxu0 0.0
        %1305 = vmatpush1.msra.mxu0 0.0
        %1306 = vmatprep.subr.mxu0 0.0
        %1307 = vmatpush1.msra.mxu0 0.0
        %1308 = vmatprep.subr.mxu0 0.0
        %1309 = vmatpush1.msra.mxu0 0.0
        %1310 = vmatprep.subr.mxu0 0.0
        %1311 = vmatpush1.msra.mxu0 0.0
        %1312 = vmatprep.subr.mxu0 0.0
        %1313 = vmatpush1.msra.mxu0 0.0
        %1314 = vmatprep.subr.mxu0 0.0
        %1315 = vmatpush1.msra.mxu0 0.0
        %1316 = vmatprep.subr.mxu0 0.0
        %1317 = vmatpush1.msra.mxu0 0.0
        %1318 = vmatprep.subr.mxu0 0.0
        %v1319 = vand.u32 %v262, 4294901760
        %1320 = vmatpush1.msra.mxu0 %v1319
        %1321 = vmatprep.subr.mxu0 0.0
        %v1322 = vand.u32 %v261, 4294901760
        %1323 = vmatpush1.msra.mxu0 %v1322
        %1324 = vmatprep.subr.mxu0 0.0
        %1325 = vmatpush2.msra.mxu0 0.0
        %1326 = vmatprep.subr.mxu0 0.0
        %1327 = vmatpush2.msra.mxu0 0.0
        %1328 = vmatprep.subr.mxu0 0.0
        %1329 = vmatpush2.msra.mxu0 0.0
        %1330 = vmatprep.subr.mxu0 0.0
        %1331 = vmatpush2.msra.mxu0 0.0
        %1332 = vmatprep.subr.mxu0 0.0
        %1333 = vmatpush2.msra.mxu0 0.0
        %1334 = vmatprep.subr.mxu0 0.0
        %1335 = vmatpush2.msra.mxu0 0.0
        %1336 = vmatprep.subr.mxu0 0.0
        %1337 = vmatpush2.msra.mxu0 0.0
        %1338 = vmatprep.subr.mxu0 0.0
        %1339 = vmatpush2.msra.mxu0 0.0
        %1340 = vmatprep.subr.mxu0 0.0
        %1341 = vmatpush2.msra.mxu0 0.0
        %1342 = vmatprep.subr.mxu0 0.0
        %1343 = vmatpush2.msra.mxu0 0.0
        %1344 = vmatprep.subr.mxu0 0.0
        %1345 = vmatpush2.msra.mxu0 0.0
        %1346 = vmatprep.subr.mxu0 0.0
        %1347 = vmatpush2.msra.mxu0 0.0
        %1348 = vmatprep.subr.mxu0 0.0
        %1349 = vmatpush2.msra.mxu0 0.0
        %1350 = vmatprep.subr.mxu0 0.0
        %1351 = vmatpush2.msra.mxu0 0.0
        %1352 = vmatprep.subr.mxu0 0.0
        %1353 = vmatpush2.msra.mxu0 0.0
        %1354 = vmatprep.subr.mxu0 0.0
        %1355 = vmatpush2.msra.mxu0 0.0
        %1356 = vmatprep.mubr.f32.mxu0 0.0
        %v1357 = vand.u32 %v862, 4294901760
        %1358 = vmatmul.mubr.f32.gmra.mxu0 %v1357
        %v1359 = vpop.f32.mrf.mxu0
        %v1360 = vadd.f32 %v1281, %v1359
        %v1361 = vpop.f32.mrf.mxu0
        %1362 = vmatprep.mubr.f32.mxu0 0.0
        %v1363 = vand.u32 %v865, 4294901760
        %1364 = vmatmul.mubr.f32.gmra.mxu0 %v1363
        %v1365 = vpop.f32.mrf.mxu0
        %v1366 = vadd.f32 %v1287, %v1365
        %v1367 = vpop.f32.mrf.mxu0
        %1368 = vdwg.mxu0
        %vm1369 = vcmp.eq.s32.totalorder %v266, 0
        %vm1370 = vcmp.eq.s32.totalorder %v267, 0
        %v1371 = vld [vmem:[%s2] sm:$0x1]
        %v1372 = vsel %vm1369, 1, 0
        %v1373 = vsel %vm1370, 1, 0
        %vm1374 = vcmp.eq.s32.totalorder %v1372, 1
        %vm1375 = vcmp.eq.s32.totalorder %v1373, 1
        %v1377 = vlaneseq
        %v1378 = vshrl.u32 %v1377, 7
        %v1379 = vsub.s32 0, %v1378
        %v1380 = vrot.slane %v1371, %v1379
        %v1382 = vsel %vm1374, %v1380, %v820
        %v1383 = vsel %vm1375, %v1380, %v826
        %v1384 = vsel %vm1374, %v1380, %v1360
        %v1385 = vsel %vm1375, %v1380, %v1366
        %1386 = vst [vmem:[%s245] sm:$0xff] %v1382
        %1387 = vst [vmem:[%s245 + $0x8] sm:$0xff] %v1383
        %1388 = vst [vmem:[%s245 + $0x10] sm:$0xff] %v1384
        %1389 = vst [vmem:[%s245 + $0x18] sm:$0xff] %v1385
        %s1390 = sand.u32 %s124, 1
        %s1391 = scalar_lea.sflag [#allocation4], %s1390
        %s1392 = sand.u32 %s124, 1
        %s1393 = smul.addr %s1392, 32
        %s1394 = scalar_lea.vmem [#allocation7], %s1393
        // Predicated region
        $region45: #{tpu_custom_call.1} parent=35 // pred_check
          %p1395 = pneg %p134
        $region46: #{tpu_custom_call.1} parent=35 // pred_check_branch
          %1397 = sbr.rel (%p1395) target = $region48
        $region47: #{tpu_custom_call.1} parent=35 // pred_region
          %s1398 = smul.u32 2, %s22
          %s1400 = ssub.s32 512, 512
          %1401 = vsyncadd %s1391, %s1400
          %s1402 = smul.addr %s1398, 2
          %s1403 = smul.addr %s1402, 128
          %s1404 = scalar_lea.hbm %s4, %s1403
          %s1405 = sshll.u32 %s1394, 4
          %s1406 = int_to_ptr.vmem [resolvable:$true] %s1405
          %1411 = dma.vmem_to_hbm [thread:$0]  %s1406, 512, %s1404, %s1391, 128, 128, 8
        $region48: #{tpu_custom_call.1} parent=35 // pred_fallthru
          _
      $region36: #{tpu_custom_call.1} parent=5 // pred_fallthru
        _
      %p1412 = scmp.le.s32.totalorder 2, %s17
      // Predicated region
      $region49: #{tpu_custom_call.1} parent=5 // pred_check
        %p1413 = pneg %p1412
      $region50: #{tpu_custom_call.1} parent=5 // pred_check_branch
        %1415 = sbr.rel (%p1413) target = $region52
      $region51: #{tpu_custom_call.1} parent=5 // pred_region
        %s1416 = ssub.s32 %s17, 2
        // Predicated region
        $region53: #{tpu_custom_call.1} parent=51 // pred_check
          %p1417 = pneg %p140
        $region54: #{tpu_custom_call.1} parent=51 // pred_check_branch
          %1419 = sbr.rel (%p1417) target = $region56
        $region55: #{tpu_custom_call.1} parent=51 // pred_region
          %s1420 = sand.u32 %s125, 1
          %s1421 = scalar_lea.sflag [#allocation4], %s1420
          %s1422 = sand.u32 %s125, 1
          %s1423 = smul.addr %s1422, 32
          %s1424 = scalar_lea.vmem [#allocation7], %s1423
          %1425 = dma.done %s1421, 512
        $region56: #{tpu_custom_call.1} parent=51 // pred_fallthru
          _
      $region52: #{tpu_custom_call.1} parent=5 // pred_fallthru
        _
    $region6: #{tpu_custom_call.1} parent=1 // loop_footer
      %s21 = sadd.s32 1, %s17
    $region7: #{tpu_custom_call.1} parent=1 // loop_footer_branch
      %16 = sbr.rel target = $region3
    $region8: #{tpu_custom_call.1} parent=1 // loop_exit
      _
    %1426 = vsyncpa [#allocation3], 1
    %s1427 = scalar_lea.sflag [#allocation3], 1
    %1428 = vsyncpa %s1427, 1
    %1429 = vsyncpa [#allocation6], 1
    %1430 = vsyncpa [#allocation4], 1
    %s1431 = scalar_lea.sflag [#allocation4], 1
    %1432 = vsyncpa %s1431, 1

</llo_original>
